<compile_context>
chip_gen: v7x
topology: tpu7x:2x2x1
jax: 0.10.0
libtpu: 0.0.40
codegen_flags: <defaults>
</compile_context>

<pallas_src>
import functools

import jax
import jax.numpy as jnp
from jax.experimental import pallas as pl
from jax.experimental.pallas import tpu as pltpu

LANE = 128            # lane width (last dim)
ACC_ROWS = 64         # accumulator height: 2 accs x 8 vregs = 16 live vregs
MAX_TILE_ROWS = 2048  # (2048, 128) f32 input block = 1 MiB per input


def _tversky_partial_kernel(x_ref, t_ref, out_ref, acc_tp_ref, acc_mix_ref, *,
                            rows, tile_rows, acc_rows, tiles_per_split,
                            alpha, beta, any_masked):
    """Accumulates per-split partial sums [TP, alpha*Sx + beta*St].

    x_ref, t_ref : VMEM (tile_rows, LANE) tiles of the flattened inputs/targets
                   (native dtype; cast to f32 here).
    out_ref      : VMEM (1, 2, 8, LANE) per-split partial sums (broadcast).
    acc_*        : VMEM (acc_rows, LANE) f32 accumulators (held in vregs while
                   folding each tile; loaded/stored once per grid step).
    """
    c = pl.program_id(0)          # split ("parallel"): one per TC on v7x
    j = pl.program_id(1)          # reduction step within split ("arbitrary")
    g = c * tiles_per_split + j   # logical global block index (may overhang)

    @pl.when(j == 0)
    def _():
        acc_tp_ref[...] = jnp.zeros_like(acc_tp_ref)
        acc_mix_ref[...] = jnp.zeros_like(acc_mix_ref)

    n_chunks = tile_rows // acc_rows

    def accumulate(valid_rows=None):
        # Register-resident accumulation: load accumulators once, fold all
        # chunks of this tile with pure VPU ops (hidden under the input DMA),
        # store once.
        acc_tp = acc_tp_ref[...]
        acc_mix = acc_mix_ref[...]
        for s in range(n_chunks):
            x = x_ref[pl.ds(s * acc_rows, acc_rows), :].astype(jnp.float32)
            t = t_ref[pl.ds(s * acc_rows, acc_rows), :].astype(jnp.float32)
            if valid_rows is not None:
                # Mask rows past the logical end of the array.  Mask the
                # inputs BEFORE multiplying: the out-of-bounds block region is
                # unspecified and may contain NaN/Inf.
                row_ids = jax.lax.broadcasted_iota(jnp.int32, (acc_rows, 1), 0)
                keep = row_ids < (valid_rows - s * acc_rows)
                x = jnp.where(keep, x, 0.0)
                t = jnp.where(keep, t, 0.0)
            acc_tp = acc_tp + x * t
            acc_mix = acc_mix + (alpha * x + beta * t)
        acc_tp_ref[...] = acc_tp
        acc_mix_ref[...] = acc_mix

    if any_masked:
        # Only the globally-last (ragged) block and the clamped overhang
        # block(s) of split 1 need masking; keep it out of the steady state.
        in_bounds = (g + 1) * tile_rows <= rows

        @pl.when(in_bounds)
        def _():
            accumulate()

        @pl.when(jnp.logical_not(in_bounds))
        def _():
            accumulate(valid_rows=rows - g * tile_rows)
    else:
        accumulate()

    @pl.when(j == pl.num_programs(1) - 1)
    def _():
        tp = jnp.sum(acc_tp_ref[...])    # single small XLU reduce per split
        mix = jnp.sum(acc_mix_ref[...])
        out_ref[0, 0, :, :] = jnp.full((8, LANE), tp, jnp.float32)
        out_ref[0, 1, :, :] = jnp.full((8, LANE), mix, jnp.float32)


def tversky_loss(inputs, targets, alpha=0.65, beta=0.35, smooth=1e-6,
                 max_tile_rows=MAX_TILE_ROWS):
    """Matches TverskyLoss.forward: 1 - (TP+s)/(TP + a*FP + b*FN + s)."""
    assert max_tile_rows % ACC_ROWS == 0

    x = inputs.reshape(-1)   # row-major flatten == torch .view(-1); no copy
    t = targets.reshape(-1)
    if not jnp.issubdtype(x.dtype, jnp.floating):
        x = x.astype(jnp.float32)
    if not jnp.issubdtype(t.dtype, jnp.floating):
        t = t.astype(jnp.float32)
    n = x.shape[0]

    rows = (n + LANE - 1) // LANE
    if rows <= max_tile_rows:
        # Single-tile case: cheap to pad the (small) array so the in-kernel
        # chunk loop is exact and no masking is needed.
        tile_rows = ACC_ROWS * ((rows + ACC_ROWS - 1) // ACC_ROWS)
        padded_rows = tile_rows
    else:
        # Multi-tile: never pad whole tiles of a large array; the ragged tail
        # block is handled with the in-kernel mask.
        tile_rows = max_tile_rows
        padded_rows = rows

    pad = padded_rows * LANE - n
    if pad:
        x = jnp.pad(x, (0, pad))   # zeros contribute 0 to all sums
        t = jnp.pad(t, (0, pad))
    x2 = x.reshape(padded_rows, LANE)
    t2 = t.reshape(padded_rows, LANE)

    total_tiles = (padded_rows + tile_rows - 1) // tile_rows
    # Always split across 2 cores when there are >= 2 tiles (v7x megacore);
    # a no-op (sequential) on single-core v5e/v6e.  Overhang blocks from an
    # odd tile count are clamped by the index_map and zeroed by the mask.
    nsplit = 2 if total_tiles >= 2 else 1
    tiles_per_split = (total_tiles + nsplit - 1) // nsplit
    any_masked = (nsplit * tiles_per_split * tile_rows) > padded_rows

    def in_index_map(c, j):
        g = c * tiles_per_split + j
        return (jnp.minimum(g, total_tiles - 1), 0)

    kernel = functools.partial(
        _tversky_partial_kernel,
        rows=padded_rows,
        tile_rows=tile_rows,
        acc_rows=ACC_ROWS,
        tiles_per_split=tiles_per_split,
        alpha=float(alpha),
        beta=float(beta),
        any_masked=any_masked,
    )

    partials = pl.pallas_call(
        kernel,
        out_shape=jax.ShapeDtypeStruct((nsplit, 2, 8, LANE), jnp.float32),
        grid_spec=pltpu.PrefetchScalarGridSpec(
            num_scalar_prefetch=0,
            grid=(nsplit, tiles_per_split),
            in_specs=[
                pl.BlockSpec((tile_rows, LANE), in_index_map),
                pl.BlockSpec((tile_rows, LANE), in_index_map),
            ],
            out_specs=pl.BlockSpec((1, 2, 8, LANE), lambda c, j: (c, 0, 0, 0)),
            scratch_shapes=[
                pltpu.VMEM((ACC_ROWS, LANE), jnp.float32),  # sum(x*t)
                pltpu.VMEM((ACC_ROWS, LANE), jnp.float32),  # sum(a*x + b*t)
            ],
        ),
        compiler_params=pltpu.CompilerParams(
            dimension_semantics=("parallel", "arbitrary"),
            vmem_limit_bytes=32 * 1024 * 1024,
        ),
    )(x2, t2)

    # Combine per-split partials and apply the Tversky formula (tiny XLA ops).
    sums = partials[:, :, 0, 0].sum(axis=0)   # [TP, alpha*Sx + beta*St]
    tp, mix = sums[0], sums[1]
    # denom = TP + a*FP + b*FN + s with FP = Sx - TP, FN = St - TP
    denom = (1.0 - alpha - beta) * tp + mix + smooth
    return 1.0 - (tp + smooth) / denom


def tversky_loss_ref(inputs, targets, alpha=0.65, beta=0.35, smooth=1e-6):
    x = inputs.reshape(-1).astype(jnp.float32)
    t = targets.reshape(-1).astype(jnp.float32)
    tp = jnp.sum(x * t)
    fp = jnp.sum((1.0 - t) * x)
    fn = jnp.sum(t * (1.0 - x))
    return 1.0 - (tp + smooth) / (tp + alpha * fp + beta * fn + smooth)


if __name__ == "__main__":
    key = jax.random.PRNGKey(0)
    k1, k2, k3, k4 = jax.random.split(key, 4)

    # Small NCHW case, matching the PyTorch module's typical binary-seg use.
    inputs = jax.nn.sigmoid(jax.random.normal(k1, (2, 4, 16, 16), jnp.float32))
    targets = (jax.random.uniform(k2, (2, 4, 16, 16)) > 0.5).astype(jnp.float32)
    loss = jax.block_until_ready(tversky_loss(inputs, targets))
    ref = jax.block_until_ready(tversky_loss_ref(inputs, targets))
    assert jnp.allclose(loss, ref, atol=1e-5, rtol=1e-4), (loss, ref)

    # Ragged, multi-tile case with a small tile override: exercises the
    # two-way TensorCore split, the clamped overhang block, and the
    # in-kernel ragged-tail mask.
    inputs2 = jax.nn.sigmoid(jax.random.normal(k3, (2, 4, 129, 129), jnp.float32))
    targets2 = (jax.random.uniform(k4, (2, 4, 129, 129)) > 0.5).astype(jnp.float32)
    loss2 = jax.block_until_ready(tversky_loss(inputs2, targets2, max_tile_rows=256))
    ref2 = jax.block_until_ready(tversky_loss_ref(inputs2, targets2))
    assert jnp.allclose(loss2, ref2, atol=1e-5, rtol=1e-4), (loss2, ref2)

    print("KERNEL_OK")
</pallas_src>

<mosaic_0001>
module attributes {stable_mosaic.version = 11 : i64} {
  func.func @_tversky_partial_kernel(%arg0: i32, %arg1: i32, %arg2: memref<64x128xf32, #tpu.memory_space<vmem>>, %arg3: memref<64x128xf32, #tpu.memory_space<vmem>>, %arg4: memref<1x2x8x128xf32, #tpu.memory_space<vmem>>, %arg5: memref<64x128xf32, #tpu.memory_space<vmem>>, %arg6: memref<64x128xf32, #tpu.memory_space<vmem>>) attributes {dimension_semantics = [#tpu.dimension_semantics<parallel>, #tpu.dimension_semantics<arbitrary>], iteration_bounds = array<i64: 1, 1>, scalar_prefetch = 0 : i64, scratch_operands = 2 : i64, tpu.core_type = #tpu.core_type<tc>, window_params = [{transform_indices = @transform_0, window_bounds = array<i64: 64, 128>}, {transform_indices = @transform_1, window_bounds = array<i64: 64, 128>}, {transform_indices = @transform_2, window_bounds = array<i64: 1, 2, 8, 128>}]} {
    %c0_i32 = arith.constant 0 : i32
    %0 = arith.cmpi eq, %arg1, %c0_i32 : i32
    %1 = arith.extui %0 : i1 to i32
    %c0_i32_0 = arith.constant 0 : i32
    %2 = arith.cmpi ne, %1, %c0_i32_0 : i32
    scf.if %2 {
      %cst_15 = arith.constant 0.000000e+00 : f32
      %20 = vector.broadcast %cst_15 : f32 to vector<64x128xf32>
      %c0_16 = arith.constant 0 : index
      %c0_17 = arith.constant 0 : index
      %21 = vector.load %arg5[%c0_16, %c0_17] : memref<64x128xf32, #tpu.memory_space<vmem>>, vector<64x128xf32>
      tpu.vector_store %arg5[%c0_16, %c0_17], %20 {strides = array<i32>} : memref<64x128xf32, #tpu.memory_space<vmem>>, vector<64x128xf32>,
      %cst_18 = arith.constant 0.000000e+00 : f32
      %22 = vector.broadcast %cst_18 : f32 to vector<64x128xf32>
      %c0_19 = arith.constant 0 : index
      %c0_20 = arith.constant 0 : index
      %23 = vector.load %arg6[%c0_19, %c0_20] : memref<64x128xf32, #tpu.memory_space<vmem>>, vector<64x128xf32>
      tpu.vector_store %arg6[%c0_19, %c0_20], %22 {strides = array<i32>} : memref<64x128xf32, #tpu.memory_space<vmem>>, vector<64x128xf32>,
    } else {
    }
    %c0 = arith.constant 0 : index
    %c0_1 = arith.constant 0 : index
    %3 = vector.load %arg5[%c0, %c0_1] : memref<64x128xf32, #tpu.memory_space<vmem>>, vector<64x128xf32>
    %c0_2 = arith.constant 0 : index
    %c0_3 = arith.constant 0 : index
    %4 = vector.load %arg6[%c0_2, %c0_3] : memref<64x128xf32, #tpu.memory_space<vmem>>, vector<64x128xf32>
    %c0_4 = arith.constant 0 : index
    %c0_5 = arith.constant 0 : index
    %5 = vector.load %arg2[%c0_4, %c0_5] : memref<64x128xf32, #tpu.memory_space<vmem>>, vector<64x128xf32>
    %c0_6 = arith.constant 0 : index
    %c0_7 = arith.constant 0 : index
    %6 = vector.load %arg3[%c0_6, %c0_7] : memref<64x128xf32, #tpu.memory_space<vmem>>, vector<64x128xf32>
    %7 = arith.mulf %5, %6 : vector<64x128xf32>
    %8 = arith.addf %3, %7 : vector<64x128xf32>
    %cst = arith.constant 6.500000e-01 : f32
    %9 = vector.broadcast %cst : f32 to vector<64x128xf32>
    %10 = arith.mulf %9, %5 : vector<64x128xf32>
    %cst_8 = arith.constant 3.500000e-01 : f32
    %11 = vector.broadcast %cst_8 : f32 to vector<64x128xf32>
    %12 = arith.mulf %11, %6 : vector<64x128xf32>
    %13 = arith.addf %10, %12 : vector<64x128xf32>
    %14 = arith.addf %4, %13 : vector<64x128xf32>
    %c0_9 = arith.constant 0 : index
    %c0_10 = arith.constant 0 : index
    %15 = vector.load %arg5[%c0_9, %c0_10] : memref<64x128xf32, #tpu.memory_space<vmem>>, vector<64x128xf32>
    tpu.vector_store %arg5[%c0_9, %c0_10], %8 {strides = array<i32>} : memref<64x128xf32, #tpu.memory_space<vmem>>, vector<64x128xf32>,
    %c0_11 = arith.constant 0 : index
    %c0_12 = arith.constant 0 : index
    %16 = vector.load %arg6[%c0_11, %c0_12] : memref<64x128xf32, #tpu.memory_space<vmem>>, vector<64x128xf32>
    tpu.vector_store %arg6[%c0_11, %c0_12], %14 {strides = array<i32>} : memref<64x128xf32, #tpu.memory_space<vmem>>, vector<64x128xf32>,
    %c0_i32_13 = arith.constant 0 : i32
    %17 = arith.cmpi eq, %arg1, %c0_i32_13 : i32
    %18 = arith.extui %17 : i1 to i32
    %c0_i32_14 = arith.constant 0 : i32
    %19 = arith.cmpi ne, %18, %c0_i32_14 : i32
    scf.if %19 {
      %c0_15 = arith.constant 0 : index
      %c0_16 = arith.constant 0 : index
      %20 = vector.load %arg5[%c0_15, %c0_16] : memref<64x128xf32, #tpu.memory_space<vmem>>, vector<64x128xf32>
      %21 = vector.shape_cast %20 : vector<64x128xf32> to vector<1x64x128xf32>
      %cst_17 = arith.constant dense<0.000000e+00> : vector<1xf32>
      %22 = vector.multi_reduction <add>, %21, %cst_17 [1, 2] : vector<1x64x128xf32> to vector<1xf32>
      %23 = vector.shape_cast %22 : vector<1xf32> to vector<1x1x1xf32>
      %24 = vector.extract %23[0, 0, 0] : f32 from vector<1x1x1xf32>
      %c0_18 = arith.constant 0 : index
      %c0_19 = arith.constant 0 : index
      %25 = vector.load %arg6[%c0_18, %c0_19] : memref<64x128xf32, #tpu.memory_space<vmem>>, vector<64x128xf32>
      %26 = vector.shape_cast %25 : vector<64x128xf32> to vector<1x64x128xf32>
      %cst_20 = arith.constant dense<0.000000e+00> : vector<1xf32>
      %27 = vector.multi_reduction <add>, %26, %cst_20 [1, 2] : vector<1x64x128xf32> to vector<1xf32>
      %28 = vector.shape_cast %27 : vector<1xf32> to vector<1x1x1xf32>
      %29 = vector.extract %28[0, 0, 0] : f32 from vector<1x1x1xf32>
      %30 = vector.broadcast %24 : f32 to vector<8x128xf32>
      %c0_21 = arith.constant 0 : index
      %c0_22 = arith.constant 0 : index
      %c0_23 = arith.constant 0 : index
      %c0_24 = arith.constant 0 : index
      %31 = vector.load %arg4[%c0_21, %c0_22, %c0_23, %c0_24] : memref<1x2x8x128xf32, #tpu.memory_space<vmem>>, vector<1x1x8x128xf32>
      %32 = vector.shape_cast %31 : vector<1x1x8x128xf32> to vector<8x128xf32>
      %33 = vector.shape_cast %30 : vector<8x128xf32> to vector<1x1x8x128xf32>
      tpu.vector_store %arg4[%c0_21, %c0_22, %c0_23, %c0_24], %33 {strides = array<i32>} : memref<1x2x8x128xf32, #tpu.memory_space<vmem>>, vector<1x1x8x128xf32>,
      %34 = vector.broadcast %29 : f32 to vector<8x128xf32>
      %c0_25 = arith.constant 0 : index
      %c1 = arith.constant 1 : index
      %c0_26 = arith.constant 0 : index
      %c0_27 = arith.constant 0 : index
      %35 = vector.load %arg4[%c0_25, %c1, %c0_26, %c0_27] : memref<1x2x8x128xf32, #tpu.memory_space<vmem>>, vector<1x1x8x128xf32>
      %36 = vector.shape_cast %35 : vector<1x1x8x128xf32> to vector<8x128xf32>
      %37 = vector.shape_cast %34 : vector<8x128xf32> to vector<1x1x8x128xf32>
      tpu.vector_store %arg4[%c0_25, %c1, %c0_26, %c0_27], %37 {strides = array<i32>} : memref<1x2x8x128xf32, #tpu.memory_space<vmem>>, vector<1x1x8x128xf32>,
    } else {
    }
    return
  }
  func.func @transform_0(%arg0: i32, %arg1: i32) -> (i32, i32) {
    %c1_i32 = arith.constant 1 : i32
    %0 = arith.muli %arg0, %c1_i32 : i32
    %1 = arith.addi %0, %arg1 : i32
    %c0_i32 = arith.constant 0 : i32
    %2 = arith.minsi %1, %c0_i32 : i32
    %c0_i32_0 = arith.constant 0 : i32
    %c0_i32_1 = arith.constant 0 : i32
    return %2, %c0_i32_0 : i32, i32
  }
  func.func @transform_1(%arg0: i32, %arg1: i32) -> (i32, i32) {
    %c1_i32 = arith.constant 1 : i32
    %0 = arith.muli %arg0, %c1_i32 : i32
    %1 = arith.addi %0, %arg1 : i32
    %c0_i32 = arith.constant 0 : i32
    %2 = arith.minsi %1, %c0_i32 : i32
    %c0_i32_0 = arith.constant 0 : i32
    %c0_i32_1 = arith.constant 0 : i32
    return %2, %c0_i32_0 : i32, i32
  }
  func.func @transform_2(%arg0: i32, %arg1: i32) -> (i32, i32, i32, i32) {
    %c0_i32 = arith.constant 0 : i32
    %c0_i32_0 = arith.constant 0 : i32
    %c0_i32_1 = arith.constant 0 : i32
    %c0_i32_2 = arith.constant 0 : i32
    return %arg0, %c0_i32, %c0_i32_0, %c0_i32_1 : i32, i32, i32, i32
  }
}

</mosaic_0001>

<llo_original>
// kernel: tpu_custom_call.1
$region0: #{tpu_custom_call.1}
  #allocation0 [shape = 'u32[]', space=smem, size = 0x4, offset = 0x4, fixed_abs, tag = 'smem constant byte address 0x4 - core index']
  #allocation1 [shape = 'u32[144,128]{1,0:T(1,128)}', space=vmem, size = 0x12000, scoped, tag = 'internal scratch']
  #allocation2 [shape = 'f32[64,128]{1,0:T(8,128)}', space=vmem, size = 0x8000, scoped, tag = 'scratch operand']
  #allocation3 [shape = 'f32[64,128]{1,0:T(8,128)}', space=vmem, size = 0x8000, scoped, tag = 'scratch operand']
  %s0 = inlined_call_operand.hbm [shape: f32[64,128], index: 0, kind: input, shape index: {}]
  %s1 = inlined_call_operand.hbm [shape: f32[64,128], index: 1, kind: input, shape index: {}]
  %s2 = inlined_call_operand.hbm [shape: f32[1,2,8,128], index: 2, kind: output, shape index: {}]
  %s3 = sld [smem:[#allocation0]]
  $region34: #{tpu_custom_call.1} parent=0
    _
  %s5 = ssub.s32 1, %s3
  %s6 = scalar_select 0, %s5, %s3
  $region1: #{tpu_custom_call.1} parent=0
    #allocation4 [shape = 'u8[32768]{0}', space=vmem, size = 0x8000, scoped, tag = 'input window, operand 0, single buffered']
    #allocation5 [shape = 's32[1]{0}', space=sflag, size = 0x4, scoped, tag = 'scoped memory for tpu_custom_call.1']
    #allocation6 [shape = 's32[1]{0}', space=sflag, size = 0x4, scoped, tag = 'scoped memory for tpu_custom_call.1']
    #allocation7 [shape = 'u8[32768]{0}', space=vmem, size = 0x8000, scoped, tag = 'input window, operand 1, single buffered']
    #allocation8 [shape = 's32[1]{0}', space=sflag, size = 0x4, scoped, tag = 'scoped memory for tpu_custom_call.1']
    #allocation9 [shape = 'u8[8192]{0}', space=vmem, size = 0x2000, scoped, tag = 'output window, operand 0, single buffered']
    %7 = vsyncpa [#allocation5], 0
    %8 = vsyncpa [#allocation8], 0
    %9 = vsyncpa [#allocation6], 0
    // Predicated region
    $region2: #{tpu_custom_call.1} parent=1 // pred_check
      _
    $region3: #{tpu_custom_call.1} parent=1 // pred_check_branch
      %11 = sbr.rel (0) target = $region5
    $region4: #{tpu_custom_call.1} parent=1 // pred_region
      %s12 = sadd.s32 0, 0
      %p13 = scmp.lt.s32.totalorder %s12, 0
      %s14 = scalar_select %p13, %s12, 0
      %s15 = smul.u32 8, %s14
      %s17 = ssub.s32 1024, 1024
      %18 = vsyncadd [#allocation5], %s17
      %s19 = smul.addr %s15, 128
      %s20 = scalar_lea.hbm %s0, %s19
      %s21 = sshll.u32 [#allocation4], 4
      %s22 = int_to_ptr.vmem [resolvable:$true] %s21
      %27 = dma.hbm_to_vmem [thread:$0]  %s20, 1024, %s22, [#allocation5], 128, 128, 8
    $region5: #{tpu_custom_call.1} parent=1 // pred_fallthru
      _
    // Predicated region
    $region6: #{tpu_custom_call.1} parent=1 // pred_check
      _
    $region7: #{tpu_custom_call.1} parent=1 // pred_check_branch
      %29 = sbr.rel (0) target = $region9
    $region8: #{tpu_custom_call.1} parent=1 // pred_region
      %s30 = sadd.s32 0, 0
      %p31 = scmp.lt.s32.totalorder %s30, 0
      %s32 = scalar_select %p31, %s30, 0
      %s33 = smul.u32 8, %s32
      %s35 = ssub.s32 1024, 1024
      %36 = vsyncadd [#allocation8], %s35
      %s37 = smul.addr %s33, 128
      %s38 = scalar_lea.hbm %s1, %s37
      %s39 = sshll.u32 [#allocation7], 4
      %s40 = int_to_ptr.vmem [resolvable:$true] %s39
      %45 = dma.hbm_to_vmem [thread:$0]  %s38, 1024, %s40, [#allocation8], 128, 128, 8
    $region9: #{tpu_custom_call.1} parent=1 // pred_fallthru
      _
    // Predicated region
    $region10: #{tpu_custom_call.1} parent=1 // pred_check
      _
    $region11: #{tpu_custom_call.1} parent=1 // pred_check_branch
      %47 = sbr.rel (0) target = $region13
    $region12: #{tpu_custom_call.1} parent=1 // pred_region
      %48 = dma.done [#allocation5], 1024
    $region13: #{tpu_custom_call.1} parent=1 // pred_fallthru
      _
    // Predicated region
    $region14: #{tpu_custom_call.1} parent=1 // pred_check
      _
    $region15: #{tpu_custom_call.1} parent=1 // pred_check_branch
      %50 = sbr.rel (0) target = $region17
    $region16: #{tpu_custom_call.1} parent=1 // pred_region
      %51 = dma.done [#allocation8], 1024
    $region17: #{tpu_custom_call.1} parent=1 // pred_fallthru
      _
    %s52 = sadd.s32 0, 0
    %p53 = scmp.lt.s32.totalorder %s52, 0
    %s54 = scalar_select %p53, %s52, 0
    %s55 = smul.u32 8, %s54
    %s56 = sadd.s32 0, 0
    %p57 = scmp.lt.s32.totalorder %s56, 0
    %s58 = scalar_select %p57, %s56, 0
    %s59 = smul.u32 8, %s58
    %p60 = scmp.eq.s32.totalorder 0, 0
    // Predicated region
    $region18: #{tpu_custom_call.1} parent=1 // pred_check
      %p61 = pneg %p60
    $region19: #{tpu_custom_call.1} parent=1 // pred_check_branch
      %63 = sbr.rel (%p61) target = $region21
    $region20: #{tpu_custom_call.1} parent=1 // pred_region
      %64 = vst [vmem:[#allocation2] sm:$0xff] 0.0
      %65 = vst [vmem:[#allocation2 + $0x8] sm:$0xff] 0.0
      %66 = vst [vmem:[#allocation2 + $0x10] sm:$0xff] 0.0
      %67 = vst [vmem:[#allocation2 + $0x18] sm:$0xff] 0.0
      %68 = vst [vmem:[#allocation2 + $0x20] sm:$0xff] 0.0
      %69 = vst [vmem:[#allocation2 + $0x28] sm:$0xff] 0.0
      %70 = vst [vmem:[#allocation2 + $0x30] sm:$0xff] 0.0
      %71 = vst [vmem:[#allocation2 + $0x38] sm:$0xff] 0.0
      %72 = vst [vmem:[#allocation3] sm:$0xff] 0.0
      %73 = vst [vmem:[#allocation3 + $0x8] sm:$0xff] 0.0
      %74 = vst [vmem:[#allocation3 + $0x10] sm:$0xff] 0.0
      %75 = vst [vmem:[#allocation3 + $0x18] sm:$0xff] 0.0
      %76 = vst [vmem:[#allocation3 + $0x20] sm:$0xff] 0.0
      %77 = vst [vmem:[#allocation3 + $0x28] sm:$0xff] 0.0
      %78 = vst [vmem:[#allocation3 + $0x30] sm:$0xff] 0.0
      %79 = vst [vmem:[#allocation3 + $0x38] sm:$0xff] 0.0
    $region21: #{tpu_custom_call.1} parent=1 // pred_fallthru
      _
    %v80 = vld [vmem:[#allocation2] sm:$0xff]
    %v81 = vld [vmem:[#allocation2 + $0x8] sm:$0xff]
    %v82 = vld [vmem:[#allocation2 + $0x10] sm:$0xff]
    %v83 = vld [vmem:[#allocation2 + $0x18] sm:$0xff]
    %v84 = vld [vmem:[#allocation2 + $0x20] sm:$0xff]
    %v85 = vld [vmem:[#allocation2 + $0x28] sm:$0xff]
    %v86 = vld [vmem:[#allocation2 + $0x30] sm:$0xff]
    %v87 = vld [vmem:[#allocation2 + $0x38] sm:$0xff]
    %v88 = vld [vmem:[#allocation3] sm:$0xff]
    %v89 = vld [vmem:[#allocation3 + $0x8] sm:$0xff]
    %v90 = vld [vmem:[#allocation3 + $0x10] sm:$0xff]
    %v91 = vld [vmem:[#allocation3 + $0x18] sm:$0xff]
    %v92 = vld [vmem:[#allocation3 + $0x20] sm:$0xff]
    %v93 = vld [vmem:[#allocation3 + $0x28] sm:$0xff]
    %v94 = vld [vmem:[#allocation3 + $0x30] sm:$0xff]
    %v95 = vld [vmem:[#allocation3 + $0x38] sm:$0xff]
    %v96 = vld [vmem:[#allocation4] sm:$0xff]
    %v97 = vld [vmem:[#allocation4 + $0x8] sm:$0xff]
    %v98 = vld [vmem:[#allocation4 + $0x10] sm:$0xff]
    %v99 = vld [vmem:[#allocation4 + $0x18] sm:$0xff]
    %v100 = vld [vmem:[#allocation4 + $0x20] sm:$0xff]
    %v101 = vld [vmem:[#allocation4 + $0x28] sm:$0xff]
    %v102 = vld [vmem:[#allocation4 + $0x30] sm:$0xff]
    %v103 = vld [vmem:[#allocation4 + $0x38] sm:$0xff]
    %v104 = vld [vmem:[#allocation7] sm:$0xff]
    %v105 = vld [vmem:[#allocation7 + $0x8] sm:$0xff]
    %v106 = vld [vmem:[#allocation7 + $0x10] sm:$0xff]
    %v107 = vld [vmem:[#allocation7 + $0x18] sm:$0xff]
    %v108 = vld [vmem:[#allocation7 + $0x20] sm:$0xff]
    %v109 = vld [vmem:[#allocation7 + $0x28] sm:$0xff]
    %v110 = vld [vmem:[#allocation7 + $0x30] sm:$0xff]
    %v111 = vld [vmem:[#allocation7 + $0x38] sm:$0xff]
    %v112 = vmul.f32 %v96, %v104
    %v113 = vmul.f32 %v97, %v105
    %v114 = vmul.f32 %v98, %v106
    %v115 = vmul.f32 %v99, %v107
    %v116 = vmul.f32 %v100, %v108
    %v117 = vmul.f32 %v101, %v109
    %v118 = vmul.f32 %v102, %v110
    %v119 = vmul.f32 %v103, %v111
    %v120 = vadd.f32 %v80, %v112
    %v121 = vadd.f32 %v81, %v113
    %v122 = vadd.f32 %v82, %v114
    %v123 = vadd.f32 %v83, %v115
    %v124 = vadd.f32 %v84, %v116
    %v125 = vadd.f32 %v85, %v117
    %v126 = vadd.f32 %v86, %v118
    %v127 = vadd.f32 %v87, %v119
    %v128 = vmul.f32 %v96, 0.65
    %v129 = vmul.f32 %v97, 0.65
    %v130 = vmul.f32 %v98, 0.65
    %v131 = vmul.f32 %v99, 0.65
    %v132 = vmul.f32 %v100, 0.65
    %v133 = vmul.f32 %v101, 0.65
    %v134 = vmul.f32 %v102, 0.65
    %v135 = vmul.f32 %v103, 0.65
    %v136 = vmul.f32 %v104, 0.35
    %v137 = vmul.f32 %v105, 0.35
    %v138 = vmul.f32 %v106, 0.35
    %v139 = vmul.f32 %v107, 0.35
    %v140 = vmul.f32 %v108, 0.35
    %v141 = vmul.f32 %v109, 0.35
    %v142 = vmul.f32 %v110, 0.35
    %v143 = vmul.f32 %v111, 0.35
    %v144 = vadd.f32 %v128, %v136
    %v145 = vadd.f32 %v129, %v137
    %v146 = vadd.f32 %v130, %v138
    %v147 = vadd.f32 %v131, %v139
    %v148 = vadd.f32 %v132, %v140
    %v149 = vadd.f32 %v133, %v141
    %v150 = vadd.f32 %v134, %v142
    %v151 = vadd.f32 %v135, %v143
    %v152 = vadd.f32 %v88, %v144
    %v153 = vadd.f32 %v89, %v145
    %v154 = vadd.f32 %v90, %v146
    %v155 = vadd.f32 %v91, %v147
    %v156 = vadd.f32 %v92, %v148
    %v157 = vadd.f32 %v93, %v149
    %v158 = vadd.f32 %v94, %v150
    %v159 = vadd.f32 %v95, %v151
    %160 = vst [vmem:[#allocation2] sm:$0xff] %v120
    %161 = vst [vmem:[#allocation2 + $0x8] sm:$0xff] %v121
    %162 = vst [vmem:[#allocation2 + $0x10] sm:$0xff] %v122
    %163 = vst [vmem:[#allocation2 + $0x18] sm:$0xff] %v123
    %164 = vst [vmem:[#allocation2 + $0x20] sm:$0xff] %v124
    %165 = vst [vmem:[#allocation2 + $0x28] sm:$0xff] %v125
    %166 = vst [vmem:[#allocation2 + $0x30] sm:$0xff] %v126
    %167 = vst [vmem:[#allocation2 + $0x38] sm:$0xff] %v127
    %168 = vst [vmem:[#allocation3] sm:$0xff] %v152
    %169 = vst [vmem:[#allocation3 + $0x8] sm:$0xff] %v153
    %170 = vst [vmem:[#allocation3 + $0x10] sm:$0xff] %v154
    %171 = vst [vmem:[#allocation3 + $0x18] sm:$0xff] %v155
    %172 = vst [vmem:[#allocation3 + $0x20] sm:$0xff] %v156
    %173 = vst [vmem:[#allocation3 + $0x28] sm:$0xff] %v157
    %174 = vst [vmem:[#allocation3 + $0x30] sm:$0xff] %v158
    %175 = vst [vmem:[#allocation3 + $0x38] sm:$0xff] %v159
    // Predicated region
    $region22: #{tpu_custom_call.1} parent=1 // pred_check
      %p176 = pneg %p60
    $region23: #{tpu_custom_call.1} parent=1 // pred_check_branch
      %178 = sbr.rel (%p176) target = $region25
    $region24: #{tpu_custom_call.1} parent=1 // pred_region
      %v179 = vld [vmem:[#allocation2] sm:$0xff]
      %v180 = vld [vmem:[#allocation2 + $0x8] sm:$0xff]
      %v181 = vld [vmem:[#allocation2 + $0x10] sm:$0xff]
      %v182 = vld [vmem:[#allocation2 + $0x18] sm:$0xff]
      %v183 = vld [vmem:[#allocation2 + $0x20] sm:$0xff]
      %v184 = vld [vmem:[#allocation2 + $0x28] sm:$0xff]
      %v185 = vld [vmem:[#allocation2 + $0x30] sm:$0xff]
      %v186 = vld [vmem:[#allocation2 + $0x38] sm:$0xff]
      %v187 = vadd.f32 %v179, %v180
      %v188 = vadd.f32 %v187, %v181
      %v189 = vadd.f32 %v188, %v182
      %v190 = vadd.f32 %v189, %v183
      %v191 = vadd.f32 %v190, %v184
      %v192 = vadd.f32 %v191, %v185
      %v193 = vadd.f32 %v192, %v186
      %194 = vadd.xlane.f32.xlu0 %v193
      %v195 = vpop.xlane.xlu0 %194
      %v196 = vrot.slane %v195, 4
      %v197 = vadd.f32 %v195, %v196
      %v198 = vrot.slane %v197, 2
      %v199 = vadd.f32 %v197, %v198
      %v200 = vrot.slane %v199, 1
      %v201 = vadd.f32 %v199, %v200
      %s202 = vtos %v201
      %v203 = vld [vmem:[#allocation3] sm:$0xff]
      %v204 = vld [vmem:[#allocation3 + $0x8] sm:$0xff]
      %v205 = vld [vmem:[#allocation3 + $0x10] sm:$0xff]
      %v206 = vld [vmem:[#allocation3 + $0x18] sm:$0xff]
      %v207 = vld [vmem:[#allocation3 + $0x20] sm:$0xff]
      %v208 = vld [vmem:[#allocation3 + $0x28] sm:$0xff]
      %v209 = vld [vmem:[#allocation3 + $0x30] sm:$0xff]
      %v210 = vld [vmem:[#allocation3 + $0x38] sm:$0xff]
      %v211 = vadd.f32 %v203, %v204
      %v212 = vadd.f32 %v211, %v205
      %v213 = vadd.f32 %v212, %v206
      %v214 = vadd.f32 %v213, %v207
      %v215 = vadd.f32 %v214, %v208
      %v216 = vadd.f32 %v215, %v209
      %v217 = vadd.f32 %v216, %v210
      %218 = vadd.xlane.f32.xlu0 %v217
      %v219 = vpop.xlane.xlu0 %218
      %v220 = vrot.slane %v219, 4
      %v221 = vadd.f32 %v219, %v220
      %v222 = vrot.slane %v221, 2
      %v223 = vadd.f32 %v221, %v222
      %v224 = vrot.slane %v223, 1
      %v225 = vadd.f32 %v223, %v224
      %s226 = vtos %v225
      %v227 = vstv %s202
      %228 = vst [vmem:[#allocation9] sm:$0xff] %v227
      %v229 = vstv %s226
      %s230 = scalar_lea.vmem [#allocation9], 8
      %231 = vst [vmem:[%s230] sm:$0xff] %v229
    $region25: #{tpu_custom_call.1} parent=1 // pred_fallthru
      _
    // Predicated region
    $region26: #{tpu_custom_call.1} parent=1 // pred_check
      _
    $region27: #{tpu_custom_call.1} parent=1 // pred_check_branch
      %233 = sbr.rel (0) target = $region29
    $region28: #{tpu_custom_call.1} parent=1 // pred_region
      %s235 = ssub.s32 256, 256
      %236 = vsyncadd [#allocation6], %s235
      %s237 = sshll.u32 [#allocation9], 4
      %s238 = int_to_ptr.vmem [resolvable:$true] %s237
      %243 = dma.vmem_to_hbm [thread:$0]  %s238, 256, %s2, [#allocation6], 128, 128, 8
    $region29: #{tpu_custom_call.1} parent=1 // pred_fallthru
      _
    // Predicated region
    $region30: #{tpu_custom_call.1} parent=1 // pred_check
      _
    $region31: #{tpu_custom_call.1} parent=1 // pred_check_branch
      %245 = sbr.rel (0) target = $region33
    $region32: #{tpu_custom_call.1} parent=1 // pred_region
      %246 = dma.done [#allocation6], 256
    $region33: #{tpu_custom_call.1} parent=1 // pred_fallthru
      _
    %247 = vsyncpa [#allocation5], 1
    %248 = vsyncpa [#allocation8], 1
    %249 = vsyncpa [#allocation6], 1

</llo_original>
